<compile_context>
chip_gen: v7x
topology: tpu7x:2x2x1
jax: 0.10.0
libtpu: 0.0.40
codegen_flags: <defaults>
</compile_context>

<pallas_src>
import functools

import numpy as np
import jax
import jax.numpy as jnp
from jax.experimental import pallas as pl
from jax.experimental.pallas import tpu as pltpu


def _vmem_capacity_bytes():
    try:
        cap = getattr(pltpu.get_tpu_info(), "vmem_capacity_bytes", None)
        if cap:
            return int(cap)
    except Exception:
        pass
    return 128 * 2**20


def _soft_ce_kernel(x_ref, t_ref, w_ref, o_ref, *, n_rows, tn, k):
    """Accumulate sum_i [ (sum_k w_ik) * lse(x_i) - sum_k w_ik * x_i[t_ik] ].

    The (8, 1) output block index depends only on grid axis 0, so it stays
    resident in VMEM across the (arbitrary) inner axis and acts as a tiny
    per-core accumulator (one scalar, broadcast over 8 sublanes).
    """
    j = pl.program_id(1)
    nblk = pl.num_programs(1)

    @pl.when(j == 0)
    def _init():
        o_ref[...] = jnp.zeros_like(o_ref)

    x = x_ref[...].astype(jnp.float32)                              # (TN, C)
    m = jnp.max(x, axis=-1, keepdims=True)
    z = x - m
    lse = jnp.log(jnp.sum(jnp.exp(z), axis=-1, keepdims=True))      # (TN, 1)

    t = t_ref[...]                                                  # (TN, K) int32
    w = w_ref[...]                                                  # (TN, K) f32
    col = jax.lax.broadcasted_iota(jnp.int32, x.shape, 1)

    # Dense soft-target row: one cross-lane reduction total (instead of K),
    # keeping the scarce XLU slots free on v7x; the K compares/selects are VALU.
    soft = jnp.zeros_like(z)
    for kk in range(k):                                             # K is tiny, static unroll
        soft = soft + jnp.where(col == t[:, kk:kk + 1], w[:, kk:kk + 1], 0.0)
    tgt_term = jnp.sum(soft * z, axis=-1, keepdims=True)            # (TN, 1)
    wsum = jnp.sum(w, axis=-1, keepdims=True)                       # (TN, 1)

    # Mask rows past the true row count (partial tail block and clamped
    # duplicate steps).  Their VMEM contents are undefined, so use a select
    # (not a multiply) so Inf/NaN garbage cannot poison the accumulator.
    vb = pl.program_id(0) * nblk + j
    row = vb * tn + jax.lax.broadcasted_iota(jnp.int32, (tn, 1), 0)
    row_loss = jnp.where(row < n_rows, wsum * lse - tgt_term, 0.0)  # (TN, 1)

    o_ref[...] += jnp.sum(row_loss)


def soft_weighted_ce_sum(logits, targets, weights):
    """sum_i [ (sum_k weights[i,k]) * logsumexp(logits[i]) - sum_k weights[i,k]*logits[i,targets[i,k]] ]."""
    n, c = logits.shape
    k = targets.shape[-1]
    itemsize = jnp.dtype(logits.dtype).itemsize
    mult = {4: 8, 2: 16, 1: 32}.get(itemsize, 8)    # sublane tile per dtype

    if n < mult:                                    # sub-tile row count: tiny host pad only in this rare case
        pad = mult - n
        logits = jnp.pad(logits, ((0, pad), (0, 0)))
        targets = jnp.pad(targets, ((0, pad), (0, 0)))
        weights = jnp.pad(weights, ((0, pad), (0, 0)))
        n = mult

    # --- tiling: biggest row tile that fits the (hardware-derived) VMEM budget,
    # accounting for lane-padded buffers: logits (TN, ceil(C/128)*128) x2 buffers
    # plus targets/weights (TN, 128) x2 arrays x2 buffers.
    cap_bytes = _vmem_capacity_bytes()
    budget = min(24 * 2**20, (cap_bytes * 3) // 8)
    c_lanes = -(-c // 128) * 128
    per_row_vmem = 2 * c_lanes * itemsize + 2 * 2 * 128 * 4
    cap = max(mult, min(8192, (budget // per_row_vmem) // mult * mult))
    per_core = -(-n // 2)                           # aim to split rows over (up to) 2 TensorCores (v7x)
    want = -(-per_core // mult) * mult
    tn = max(mult, min(cap, want, (n // mult) * mult))
    total_blocks = -(-n // tn)
    num_partials = min(2, total_blocks)
    nblk = -(-total_blocks // num_partials)
    last_blk = total_blocks - 1

    # All three inputs share the same (clamped) row-block index map, so rows
    # always line up; clamped duplicate steps are fully masked in-kernel.
    def row_map(p, j):
        return (jnp.minimum(p * nblk + j, last_blk), 0)

    need = tn * per_row_vmem + (4 << 20)
    hard_cap = max(16 * 2**20, min(96 * 2**20, (cap_bytes * 3) // 4))
    vmem_limit = int(min(hard_cap, max(16 * 2**20, need)))

    kernel = functools.partial(_soft_ce_kernel, n_rows=n, tn=tn, k=k)

    partials = pl.pallas_call(
        kernel,
        out_shape=jax.ShapeDtypeStruct((num_partials * 8, 1), jnp.float32),
        grid_spec=pltpu.PrefetchScalarGridSpec(
            num_scalar_prefetch=0,
            grid=(num_partials, nblk),
            in_specs=[
                pl.BlockSpec((tn, c), row_map),    # logits: full-extent C, no 128 pad
                pl.BlockSpec((tn, k), row_map),    # targets (K sparse classes per row)
                pl.BlockSpec((tn, k), row_map),    # weights
            ],
            out_specs=pl.BlockSpec((8, 1), lambda p, j: (p, 0)),   # per-core resident accumulator
        ),
        compiler_params=pltpu.CompilerParams(
            dimension_semantics=("parallel", "arbitrary"),
            vmem_limit_bytes=vmem_limit),
    )(logits, targets, weights)

    # Each core's 8 sublanes carry the same partial sum; take one per core.
    return jnp.sum(partials.reshape(num_partials, 8)[:, 0])


class SequenceSmoothLossV1Pallas:
    """JAX/Pallas port of SequenceSmoothLoss_v1.forward."""

    def __init__(self, smooth_matrix, alpha=0.05, ignore_index=0):
        self.smoothing = float(alpha)
        self.smoothing_map = smooth_matrix
        self.ignore_index = ignore_index

    def _build_soft_targets(self, gt_strs, encode, T):
        # (original hardcodes batch_max_length=25; here it is derived as T-1)
        per_item = []
        for gt in gt_strs:
            text, _ = encode([gt], batch_max_length=T - 1)
            base_t = np.asarray(text)[0, 1:]
            if gt in self.smoothing_map and len(self.smoothing_map[gt]) > 0:
                exps = [(base_t, 1.0 - self.smoothing)]
                cand = self.smoothing_map[gt]
                sum_num = float(sum(cand.values()))
                for cand_str, v in cand.items():
                    tk, _ = encode([cand_str], batch_max_length=T - 1)
                    exps.append((np.asarray(tk)[0, 1:], v / sum_num * self.smoothing))
            else:
                exps = [(base_t, 1.0)]
            per_item.append(exps)

        k = max(len(e) for e in per_item)
        B = len(gt_strs)
        tgt = np.zeros((B, T, k), np.int32)
        w = np.zeros((B, T, k), np.float32)
        for b, exps in enumerate(per_item):
            for kk, (tvec, wk) in enumerate(exps):
                tgt[b, :, kk] = np.asarray(tvec, np.int32)
                w[b, :, kk] = wk
        # Fold ignore_index into the weights (zero weight == zero CE contribution).
        w = np.where(tgt == self.ignore_index, 0.0, w).astype(np.float32)
        return tgt, w, k

    def __call__(self, inputs, gt_strs, encode):
        inputs = jnp.asarray(inputs)
        B, T, C = inputs.shape
        norm_len = B * T

        # TODO(synk): the per-string candidate expansion (dict lookups + encode,
        # dynamic candidate counts) has no clean Pallas equivalent; it stays on
        # host but now only produces the tiny (B, T, K) soft-target tables — the
        # (B, T, C) logits are never expanded, gathered or padded on device.
        tgt, w, k = self._build_soft_targets(gt_strs, encode, T)

        x = inputs.reshape(B * T, C)                 # free reshape; single HBM read inside the kernel
        total = soft_weighted_ce_sum(
            x,
            jnp.asarray(tgt.reshape(B * T, k)),
            jnp.asarray(w.reshape(B * T, k)))
        return total / jnp.float32(norm_len)


class _AttnLabelEncoder:
    """Minimal Attn-style label converter: [GO]=0, [s]=1, characters from 2."""

    def __init__(self, character):
        self.dict = {c: i + 2 for i, c in enumerate(character)}
        self.num_classes = len(character) + 2

    def __call__(self, text_list, batch_max_length=25):
        length = np.asarray([len(s) + 1 for s in text_list], np.int64)
        batch_text = np.zeros((len(text_list), batch_max_length + 2), np.int64)
        for i, s in enumerate(text_list):
            idxs = [self.dict[ch] for ch in s] + [1]          # append [s]
            batch_text[i, 1:1 + len(idxs)] = idxs
        return batch_text, length


def _reference_forward(inputs, gt_strs, encode, smoothing_map, alpha):
    """Plain float64 numpy replica of SequenceSmoothLoss_v1.forward."""
    inputs = np.asarray(inputs, np.float64)
    B, T, C = inputs.shape
    norm_len = B * T
    x_rows, tgt_rows, w_rows = [], [], []
    for idx, gt in enumerate(gt_strs):
        text, _ = encode([gt], batch_max_length=T - 1)
        tgt_rows.append(np.asarray(text)[0, 1:])
        x_rows.append(inputs[idx])
        if gt in smoothing_map and len(smoothing_map[gt]) > 0:
            w_rows.append((1.0 - alpha) * np.ones(T))
            cand = smoothing_map[gt]
            sum_num = float(sum(cand.values()))
            for k, v in cand.items():
                x_rows.append(inputs[idx])
                tk, _ = encode([k], batch_max_length=T - 1)
                tgt_rows.append(np.asarray(tk)[0, 1:])
                w_rows.append(v / sum_num * alpha * np.ones(T))
        else:
            w_rows.append(np.ones(T))
    x = np.concatenate(x_rows, 0)
    t = np.concatenate(tgt_rows, 0).astype(np.int64)
    w = np.concatenate(w_rows, 0)
    m = x.max(-1, keepdims=True)
    logp = (x - m) - np.log(np.exp(x - m).sum(-1, keepdims=True))
    ce = -logp[np.arange(x.shape[0]), t]
    ce = np.where(t == 0, 0.0, ce)                     # ignore_index=0
    return float((w * ce).sum() / norm_len)


if __name__ == "__main__":
    chars = "abcdefghijklmnopqrstuvwxyz0123456789"
    encoder = _AttnLabelEncoder(chars)
    C = encoder.num_classes                 # 38 classes, used un-padded in the kernel
    batch_max_length = 7
    B, T = 2, batch_max_length + 1          # (2, 8, 38) logits

    key = jax.random.PRNGKey(0)
    inputs = jax.random.normal(key, (B, T, C), dtype=jnp.float32)

    gt_strs = ["hello", "world"]
    smoothing_map = {
        "hello": {"he1lo": 2.0, "hallo": 1.0},   # "world" has no candidates -> weight 1.0
    }
    alpha = 0.05

    loss_mod = SequenceSmoothLossV1Pallas(smoothing_map, alpha=alpha)
    loss = loss_mod(inputs, gt_strs, encoder)
    jax.block_until_ready(loss)

    ref = _reference_forward(np.asarray(inputs), gt_strs, encoder,
                             smoothing_map, alpha)
    assert np.allclose(float(loss), ref, rtol=1e-4, atol=1e-5), (float(loss), ref)

    print("KERNEL_OK")
</pallas_src>

<mosaic_0001>
module attributes {stable_mosaic.version = 11 : i64} {
  func.func @_soft_ce_kernel(%arg0: i32, %arg1: i32, %arg2: memref<8x38xf32, #tpu.memory_space<vmem>>, %arg3: memref<8x3xi32, #tpu.memory_space<vmem>>, %arg4: memref<8x3xf32, #tpu.memory_space<vmem>>, %arg5: memref<8x1xf32, #tpu.memory_space<vmem>>) attributes {dimension_semantics = [#tpu.dimension_semantics<parallel>, #tpu.dimension_semantics<arbitrary>], iteration_bounds = array<i64: 2, 1>, scalar_prefetch = 0 : i64, scratch_operands = 0 : i64, tpu.core_type = #tpu.core_type<tc>, window_params = [{transform_indices = @transform_0, window_bounds = array<i64: 8, 38>}, {transform_indices = @transform_1, window_bounds = array<i64: 8, 3>}, {transform_indices = @transform_2, window_bounds = array<i64: 8, 3>}, {transform_indices = @transform_3, window_bounds = array<i64: 8, 1>}]} {
    %c0_i32 = arith.constant 0 : i32
    %0 = arith.cmpi eq, %arg1, %c0_i32 : i32
    %1 = arith.extui %0 : i1 to i32
    %c0_i32_0 = arith.constant 0 : i32
    %2 = arith.cmpi ne, %1, %c0_i32_0 : i32
    scf.if %2 {
      %cst_19 = arith.constant 0.000000e+00 : f32
      %68 = vector.broadcast %cst_19 : f32 to vector<8x1xf32>
      %c0_20 = arith.constant 0 : index
      %c0_21 = arith.constant 0 : index
      %69 = vector.load %arg5[%c0_20, %c0_21] : memref<8x1xf32, #tpu.memory_space<vmem>>, vector<8x1xf32>
      tpu.vector_store %arg5[%c0_20, %c0_21], %68 {strides = array<i32>} : memref<8x1xf32, #tpu.memory_space<vmem>>, vector<8x1xf32>,
    } else {
    }
    %c0 = arith.constant 0 : index
    %c0_1 = arith.constant 0 : index
    %3 = vector.load %arg2[%c0, %c0_1] : memref<8x38xf32, #tpu.memory_space<vmem>>, vector<8x38xf32>
    %cst = arith.constant dense<0xFF800000> : vector<8xf32>
    %4 = vector.multi_reduction <maximumf>, %3, %cst [1] : vector<8x38xf32> to vector<8xf32>
    %5 = vector.shape_cast %4 : vector<8xf32> to vector<8x1xf32>
    %6 = vector.broadcast %5 : vector<8x1xf32> to vector<8x38xf32>
    %7 = arith.subf %3, %6 : vector<8x38xf32>
    %8 = math.exp %7 : vector<8x38xf32>
    %cst_2 = arith.constant dense<0.000000e+00> : vector<8xf32>
    %9 = vector.multi_reduction <add>, %8, %cst_2 [1] : vector<8x38xf32> to vector<8xf32>
    %10 = vector.shape_cast %9 : vector<8xf32> to vector<8x1xf32>
    %11 = math.log %10 : vector<8x1xf32>
    %c0_3 = arith.constant 0 : index
    %c0_4 = arith.constant 0 : index
    %12 = vector.load %arg3[%c0_3, %c0_4] : memref<8x3xi32, #tpu.memory_space<vmem>>, vector<8x3xi32>
    %c0_5 = arith.constant 0 : index
    %c0_6 = arith.constant 0 : index
    %13 = vector.load %arg4[%c0_5, %c0_6] : memref<8x3xf32, #tpu.memory_space<vmem>>, vector<8x3xf32>
    %14 = tpu.iota {dimensions = array<i32: 1>} : vector<8x38xi32>
    %cst_7 = arith.constant 0.000000e+00 : f32
    %15 = vector.broadcast %cst_7 : f32 to vector<8x38xf32>
    %16 = vector.extract_strided_slice %12 {offsets = [0, 0], sizes = [8, 1], strides = [1, 1]} : vector<8x3xi32> to vector<8x1xi32>
    %17 = vector.broadcast %16 : vector<8x1xi32> to vector<8x38xi32>
    %18 = arith.cmpi eq, %14, %17 : vector<8x38xi32>
    %19 = vector.extract_strided_slice %13 {offsets = [0, 0], sizes = [8, 1], strides = [1, 1]} : vector<8x3xf32> to vector<8x1xf32>
    %cst_8 = arith.constant 0.000000e+00 : f32
    %20 = vector.shape_cast %19 : vector<8x1xf32> to vector<8x1xf32>
    %21 = vector.broadcast %20 : vector<8x1xf32> to vector<8x38xf32>
    %22 = vector.broadcast %cst_8 : f32 to vector<8x38xf32>
    %23 = arith.select %18, %21, %22 : vector<8x38xi1>, vector<8x38xf32>
    %24 = arith.addf %15, %23 : vector<8x38xf32>
    %25 = vector.extract_strided_slice %12 {offsets = [0, 1], sizes = [8, 1], strides = [1, 1]} : vector<8x3xi32> to vector<8x1xi32>
    %26 = vector.broadcast %25 : vector<8x1xi32> to vector<8x38xi32>
    %27 = arith.cmpi eq, %14, %26 : vector<8x38xi32>
    %28 = vector.extract_strided_slice %13 {offsets = [0, 1], sizes = [8, 1], strides = [1, 1]} : vector<8x3xf32> to vector<8x1xf32>
    %cst_9 = arith.constant 0.000000e+00 : f32
    %29 = vector.shape_cast %28 : vector<8x1xf32> to vector<8x1xf32>
    %30 = vector.broadcast %29 : vector<8x1xf32> to vector<8x38xf32>
    %31 = vector.broadcast %cst_9 : f32 to vector<8x38xf32>
    %32 = arith.select %27, %30, %31 : vector<8x38xi1>, vector<8x38xf32>
    %33 = arith.addf %24, %32 : vector<8x38xf32>
    %34 = vector.extract_strided_slice %12 {offsets = [0, 2], sizes = [8, 1], strides = [1, 1]} : vector<8x3xi32> to vector<8x1xi32>
    %35 = vector.broadcast %34 : vector<8x1xi32> to vector<8x38xi32>
    %36 = arith.cmpi eq, %14, %35 : vector<8x38xi32>
    %37 = vector.extract_strided_slice %13 {offsets = [0, 2], sizes = [8, 1], strides = [1, 1]} : vector<8x3xf32> to vector<8x1xf32>
    %cst_10 = arith.constant 0.000000e+00 : f32
    %38 = vector.shape_cast %37 : vector<8x1xf32> to vector<8x1xf32>
    %39 = vector.broadcast %38 : vector<8x1xf32> to vector<8x38xf32>
    %40 = vector.broadcast %cst_10 : f32 to vector<8x38xf32>
    %41 = arith.select %36, %39, %40 : vector<8x38xi1>, vector<8x38xf32>
    %42 = arith.addf %33, %41 : vector<8x38xf32>
    %43 = arith.mulf %42, %7 : vector<8x38xf32>
    %cst_11 = arith.constant dense<0.000000e+00> : vector<8xf32>
    %44 = vector.multi_reduction <add>, %43, %cst_11 [1] : vector<8x38xf32> to vector<8xf32>
    %45 = vector.shape_cast %44 : vector<8xf32> to vector<8x1xf32>
    %cst_12 = arith.constant dense<0.000000e+00> : vector<8xf32>
    %46 = vector.multi_reduction <add>, %13, %cst_12 [1] : vector<8x3xf32> to vector<8xf32>
    %47 = vector.shape_cast %46 : vector<8xf32> to vector<8x1xf32>
    %c1_i32 = arith.constant 1 : i32
    %48 = arith.muli %arg0, %c1_i32 : i32
    %49 = arith.addi %48, %arg1 : i32
    %c8_i32 = arith.constant 8 : i32
    %50 = arith.muli %49, %c8_i32 : i32
    %51 = tpu.iota {dimensions = array<i32: 0>} : vector<8x1xi32>
    %52 = vector.broadcast %50 : i32 to vector<8x1xi32>
    %53 = arith.addi %52, %51 : vector<8x1xi32>
    %c16_i32 = arith.constant 16 : i32
    %54 = vector.broadcast %c16_i32 : i32 to vector<8x1xi32>
    %55 = arith.cmpi slt, %53, %54 : vector<8x1xi32>
    %56 = arith.mulf %47, %11 : vector<8x1xf32>
    %57 = arith.subf %56, %45 : vector<8x1xf32>
    %cst_13 = arith.constant 0.000000e+00 : f32
    %58 = vector.broadcast %cst_13 : f32 to vector<8x1xf32>
    %59 = arith.select %55, %57, %58 : vector<8x1xi1>, vector<8x1xf32>
    %c0_14 = arith.constant 0 : index
    %c0_15 = arith.constant 0 : index
    %60 = vector.load %arg5[%c0_14, %c0_15] : memref<8x1xf32, #tpu.memory_space<vmem>>, vector<8x1xf32>
    %61 = vector.shape_cast %59 : vector<8x1xf32> to vector<1x8x1xf32>
    %cst_16 = arith.constant dense<0.000000e+00> : vector<1xf32>
    %62 = vector.multi_reduction <add>, %61, %cst_16 [1, 2] : vector<1x8x1xf32> to vector<1xf32>
    %63 = vector.shape_cast %62 : vector<1xf32> to vector<1x1x1xf32>
    %64 = vector.extract %63[0, 0, 0] : f32 from vector<1x1x1xf32>
    %65 = vector.broadcast %64 : f32 to vector<8x1xf32>
    %66 = arith.addf %60, %65 : vector<8x1xf32>
    %c0_17 = arith.constant 0 : index
    %c0_18 = arith.constant 0 : index
    %67 = vector.load %arg5[%c0_17, %c0_18] : memref<8x1xf32, #tpu.memory_space<vmem>>, vector<8x1xf32>
    tpu.vector_store %arg5[%c0_17, %c0_18], %66 {strides = array<i32>} : memref<8x1xf32, #tpu.memory_space<vmem>>, vector<8x1xf32>,
    return
  }
  func.func @transform_0(%arg0: i32, %arg1: i32) -> (i32, i32) {
    %c1_i32 = arith.constant 1 : i32
    %0 = arith.muli %arg0, %c1_i32 : i32
    %1 = arith.addi %0, %arg1 : i32
    %c1_i32_0 = arith.constant 1 : i32
    %2 = arith.minsi %1, %c1_i32_0 : i32
    %c0_i32 = arith.constant 0 : i32
    %c0_i32_1 = arith.constant 0 : i32
    return %2, %c0_i32 : i32, i32
  }
  func.func @transform_1(%arg0: i32, %arg1: i32) -> (i32, i32) {
    %c1_i32 = arith.constant 1 : i32
    %0 = arith.muli %arg0, %c1_i32 : i32
    %1 = arith.addi %0, %arg1 : i32
    %c1_i32_0 = arith.constant 1 : i32
    %2 = arith.minsi %1, %c1_i32_0 : i32
    %c0_i32 = arith.constant 0 : i32
    %c0_i32_1 = arith.constant 0 : i32
    return %2, %c0_i32 : i32, i32
  }
  func.func @transform_2(%arg0: i32, %arg1: i32) -> (i32, i32) {
    %c1_i32 = arith.constant 1 : i32
    %0 = arith.muli %arg0, %c1_i32 : i32
    %1 = arith.addi %0, %arg1 : i32
    %c1_i32_0 = arith.constant 1 : i32
    %2 = arith.minsi %1, %c1_i32_0 : i32
    %c0_i32 = arith.constant 0 : i32
    %c0_i32_1 = arith.constant 0 : i32
    return %2, %c0_i32 : i32, i32
  }
  func.func @transform_3(%arg0: i32, %arg1: i32) -> (i32, i32) {
    %c0_i32 = arith.constant 0 : i32
    %c0_i32_0 = arith.constant 0 : i32
    return %arg0, %c0_i32 : i32, i32
  }
}

</mosaic_0001>

<llo_original>
// kernel: tpu_custom_call.1
$region0: #{tpu_custom_call.1}
  #allocation0 [shape = 'u32[]', space=smem, size = 0x4, offset = 0x4, fixed_abs, tag = 'smem constant byte address 0x4 - core index']
  #allocation1 [shape = 'u32[144,128]{1,0:T(1,128)}', space=vmem, size = 0x12000, scoped, tag = 'internal scratch']
  %s0 = inlined_call_operand.vmem [shape: f32[16,38], index: 0, kind: input, shape index: {}]
  %s1 = inlined_call_operand.vmem [shape: s32[16,3], index: 1, kind: input, shape index: {}]
  %s2 = inlined_call_operand.vmem [shape: f32[16,3], index: 2, kind: input, shape index: {}]
  %s3 = inlined_call_operand.vmem [shape: f32[16,1], index: 3, kind: output, shape index: {}]
  %s4 = sld [smem:[#allocation0]]
  $region49: #{tpu_custom_call.1} parent=0
    _
  %s6 = ssub.s32 1, %s4
  %s7 = scalar_select 0, %s6, %s4
  loop: start=0, step=1, limit=4
  $region2: #{tpu_custom_call.1} parent=0 // loop_pre_header
    _
  $region3: #{tpu_custom_call.1} parent=0 // loop_header
    %s9 = sphi 0, %s13
    %p10 = scmp.ge.s32.totalorder %s9, 4
    %s16 = sphi 0, %s28
    %s17 = sphi 0, %s24
    %s18 = sphi 0, %s16
    %s19 = sphi 0, %s17
    %s20 = sphi 0, %s18
    %s21 = sphi 0, %s19
    %s37 = sphi 0, %s39
    %s40 = sphi 0, %s37
    %s41 = sphi 0, %s40
    %s57 = sphi 0, %s41
    %s69 = sphi 0, %s71
    %s72 = sphi 0, %s69
    %s73 = sphi 0, %s72
    %s89 = sphi 0, %s73
    %s101 = sphi 0, %s103
    %s104 = sphi 0, %s101
    %s105 = sphi 0, %s104
    %s121 = sphi 0, %s105
    %s127 = sphi 0, %s129
    %s130 = sphi 0, %s127
    %s131 = sphi 0, %s130
    %s147 = sphi 0, %s131
  $region4: #{tpu_custom_call.1} parent=0 // loop_header_branch
    %12 = sbr.rel (%p10) target = $region8
  $region5: #{tpu_custom_call.1} parent=0 // loop_body
    %s14 = ssub.s32 %s9, 1
    %s15 = ssub.s32 %s9, 2
    %s22 = sadd.s32 1, %s17
    %p23 = scmp.ge.s32.totalorder %s22, 1
    %s24 = scalar_select %p23, 0, %s22
    %s25 = sadd.s32 1, %s16
    %s26 = scalar_select %p23, %s25, %s16
    %p27 = scmp.ge.s32.totalorder %s26, 2
    %s28 = scalar_select %p27, 0, %s26
    %s29 = sadd.s32 %s16, %s17
    %p30 = scmp.lt.s32.totalorder %s29, 1
    %s31 = scalar_select %p30, %s29, 1
    %s32 = sadd.s32 %s28, %s24
    %p33 = scmp.lt.s32.totalorder %s32, 1
    %s34 = scalar_select %p33, %s32, 1
    %s35 = ssub.s32 %s31, %s34
    %p36 = scmp.eq.s32.totalorder %s35, 0
    %s38 = sadd.s32 %s37, 1
    %s39 = scalar_select %p36, %s37, %s38
    %p42 = pneg %p36
    %p43 = scmp.eq.s32.totalorder %s9, 1
    %p44 = por %p42, %p43
    %p45 = scmp.ne.s32.totalorder %s37, %s40
    %p46 = scmp.eq.s32.totalorder %s9, 0
    %p47 = por %p45, %p46
    %p48 = scmp.ne.s32.totalorder %s37, %s40
    %p49 = scmp.eq.s32.totalorder %s14, 1
    %p50 = por %p48, %p49
    %p51 = scmp.ne.s32.totalorder %s40, %s41
    %p52 = scmp.eq.s32.totalorder %s14, 0
    %p53 = por %p51, %p52
    %p54 = scmp.ne.s32.totalorder %s40, %s41
    %p55 = scmp.eq.s32.totalorder %s15, 1
    %p56 = por %p54, %p55
    %p58 = scmp.ne.s32.totalorder %s41, %s57
    %p59 = scmp.eq.s32.totalorder %s15, 0
    %p60 = por %p58, %p59
    %s61 = sadd.s32 %s16, %s17
    %p62 = scmp.lt.s32.totalorder %s61, 1
    %s63 = scalar_select %p62, %s61, 1
    %s64 = sadd.s32 %s28, %s24
    %p65 = scmp.lt.s32.totalorder %s64, 1
    %s66 = scalar_select %p65, %s64, 1
    %s67 = ssub.s32 %s63, %s66
    %p68 = scmp.eq.s32.totalorder %s67, 0
    %s70 = sadd.s32 %s69, 1
    %s71 = scalar_select %p68, %s69, %s70
    %p74 = pneg %p68
    %p75 = scmp.eq.s32.totalorder %s9, 1
    %p76 = por %p74, %p75
    %p77 = scmp.ne.s32.totalorder %s69, %s72
    %p78 = scmp.eq.s32.totalorder %s9, 0
    %p79 = por %p77, %p78
    %p80 = scmp.ne.s32.totalorder %s69, %s72
    %p81 = scmp.eq.s32.totalorder %s14, 1
    %p82 = por %p80, %p81
    %p83 = scmp.ne.s32.totalorder %s72, %s73
    %p84 = scmp.eq.s32.totalorder %s14, 0
    %p85 = por %p83, %p84
    %p86 = scmp.ne.s32.totalorder %s72, %s73
    %p87 = scmp.eq.s32.totalorder %s15, 1
    %p88 = por %p86, %p87
    %p90 = scmp.ne.s32.totalorder %s73, %s89
    %p91 = scmp.eq.s32.totalorder %s15, 0
    %p92 = por %p90, %p91
    %s93 = sadd.s32 %s16, %s17
    %p94 = scmp.lt.s32.totalorder %s93, 1
    %s95 = scalar_select %p94, %s93, 1
    %s96 = sadd.s32 %s28, %s24
    %p97 = scmp.lt.s32.totalorder %s96, 1
    %s98 = scalar_select %p97, %s96, 1
    %s99 = ssub.s32 %s95, %s98
    %p100 = scmp.eq.s32.totalorder %s99, 0
    %s102 = sadd.s32 %s101, 1
    %s103 = scalar_select %p100, %s101, %s102
    %p106 = pneg %p100
    %p107 = scmp.eq.s32.totalorder %s9, 1
    %p108 = por %p106, %p107
    %p109 = scmp.ne.s32.totalorder %s101, %s104
    %p110 = scmp.eq.s32.totalorder %s9, 0
    %p111 = por %p109, %p110
    %p112 = scmp.ne.s32.totalorder %s101, %s104
    %p113 = scmp.eq.s32.totalorder %s14, 1
    %p114 = por %p112, %p113
    %p115 = scmp.ne.s32.totalorder %s104, %s105
    %p116 = scmp.eq.s32.totalorder %s14, 0
    %p117 = por %p115, %p116
    %p118 = scmp.ne.s32.totalorder %s104, %s105
    %p119 = scmp.eq.s32.totalorder %s15, 1
    %p120 = por %p118, %p119
    %p122 = scmp.ne.s32.totalorder %s105, %s121
    %p123 = scmp.eq.s32.totalorder %s15, 0
    %p124 = por %p122, %p123
    %s125 = ssub.s32 %s16, %s28
    %p126 = scmp.eq.s32.totalorder %s125, 0
    %s128 = sadd.s32 %s127, 1
    %s129 = scalar_select %p126, %s127, %s128
    %p132 = pneg %p126
    %p133 = scmp.eq.s32.totalorder %s9, 1
    %p134 = por %p132, %p133
    %p135 = scmp.ne.s32.totalorder %s127, %s130
    %p136 = scmp.eq.s32.totalorder %s9, 0
    %p137 = por %p135, %p136
    %p138 = scmp.ne.s32.totalorder %s127, %s130
    %p139 = scmp.eq.s32.totalorder %s14, 1
    %p140 = por %p138, %p139
    %p141 = scmp.ne.s32.totalorder %s130, %s131
    %p142 = scmp.eq.s32.totalorder %s14, 0
    %p143 = por %p141, %p142
    %p144 = scmp.ne.s32.totalorder %s130, %s131
    %p145 = scmp.eq.s32.totalorder %s15, 1
    %p146 = por %p144, %p145
    %p148 = scmp.ne.s32.totalorder %s131, %s147
    %p149 = scmp.eq.s32.totalorder %s15, 0
    %p150 = por %p148, %p149
    %p151 = scmp.le.s32.totalorder 1, %s9
    %p152 = scmp.lt.s32.totalorder %s9, 3
    %p153 = pnand %p151, %p152
    %p154 = pneg %p153
    // Predicated region
    $region9: #{tpu_custom_call.1} parent=5 // pred_check
      _
    $region10: #{tpu_custom_call.1} parent=5 // pred_check_branch
      %156 = sbr.rel (%p153) target = $region12
    $region11: #{tpu_custom_call.1} parent=5 // pred_region
      %s157 = ssub.s32 %s9, 1
    $region12: #{tpu_custom_call.1} parent=5 // pred_fallthru
      _
    %p158 = scmp.lt.s32.totalorder %s9, 2
    // Predicated region
    $region13: #{tpu_custom_call.1} parent=5 // pred_check
      %p159 = pneg %p158
    $region14: #{tpu_custom_call.1} parent=5 // pred_check_branch
      %161 = sbr.rel (%p159) target = $region16
    $region15: #{tpu_custom_call.1} parent=5 // pred_region
      // Predicated region
      $region17: #{tpu_custom_call.1} parent=15 // pred_check
        %p162 = pneg %p47
      $region18: #{tpu_custom_call.1} parent=15 // pred_check_branch
        %164 = sbr.rel (%p162) target = $region20
      $region19: #{tpu_custom_call.1} parent=15 // pred_region
        %s165 = sadd.s32 %s16, %s17
        %p166 = scmp.lt.s32.totalorder %s165, 1
        %s167 = scalar_select %p166, %s165, 1
        %p168 = scmp.lt.s32.totalorder %s167, 1
        %s169 = scalar_select %p168, %s167, 1
        %s170 = smul.addr %s169, 8
        %s171 = scalar_lea.vmem %s0, %s170
        %s172 = sadd.s32 %s16, %s17
        %p173 = scmp.lt.s32.totalorder %s172, 1
        %s174 = scalar_select %p173, %s172, 1
      $region20: #{tpu_custom_call.1} parent=15 // pred_fallthru
        _
      // Predicated region
      $region21: #{tpu_custom_call.1} parent=15 // pred_check
        %p175 = pneg %p79
      $region22: #{tpu_custom_call.1} parent=15 // pred_check_branch
        %177 = sbr.rel (%p175) target = $region24
      $region23: #{tpu_custom_call.1} parent=15 // pred_region
        %s178 = sadd.s32 %s16, %s17
        %p179 = scmp.lt.s32.totalorder %s178, 1
        %s180 = scalar_select %p179, %s178, 1
        %p181 = scmp.lt.s32.totalorder %s180, 1
        %s182 = scalar_select %p181, %s180, 1
        %s183 = smul.addr %s182, 8
        %s184 = scalar_lea.vmem %s1, %s183
        %s185 = sadd.s32 %s16, %s17
        %p186 = scmp.lt.s32.totalorder %s185, 1
        %s187 = scalar_select %p186, %s185, 1
      $region24: #{tpu_custom_call.1} parent=15 // pred_fallthru
        _
      // Predicated region
      $region25: #{tpu_custom_call.1} parent=15 // pred_check
        %p188 = pneg %p111
      $region26: #{tpu_custom_call.1} parent=15 // pred_check_branch
        %190 = sbr.rel (%p188) target = $region28
      $region27: #{tpu_custom_call.1} parent=15 // pred_region
        %s191 = sadd.s32 %s16, %s17
        %p192 = scmp.lt.s32.totalorder %s191, 1
        %s193 = scalar_select %p192, %s191, 1
        %p194 = scmp.lt.s32.totalorder %s193, 1
        %s195 = scalar_select %p194, %s193, 1
        %s196 = smul.addr %s195, 8
        %s197 = scalar_lea.vmem %s2, %s196
        %s198 = sadd.s32 %s16, %s17
        %p199 = scmp.lt.s32.totalorder %s198, 1
        %s200 = scalar_select %p199, %s198, 1
      $region28: #{tpu_custom_call.1} parent=15 // pred_fallthru
        _
    $region16: #{tpu_custom_call.1} parent=5 // pred_fallthru
      _
    %p201 = scmp.le.s32.totalorder 1, %s9
    %p202 = scmp.lt.s32.totalorder %s9, 3
    %p203 = pnand %p201, %p202
    %p204 = pneg %p203
    // Predicated region
    $region29: #{tpu_custom_call.1} parent=5 // pred_check
      _
    $region30: #{tpu_custom_call.1} parent=5 // pred_check_branch
      %206 = sbr.rel (%p203) target = $region32
    $region31: #{tpu_custom_call.1} parent=5 // pred_region
      %s207 = ssub.s32 %s9, 1
      %s208 = sadd.s32 %s18, %s19
      %p209 = scmp.lt.s32.totalorder %s208, 1
      %s210 = scalar_select %p209, %s208, 1
      %p211 = scmp.lt.s32.totalorder %s210, 1
      %s212 = scalar_select %p211, %s210, 1
      %s213 = smul.addr %s212, 8
      %s214 = scalar_lea.vmem %s0, %s213
      %p215 = pneg %p53
      %p216 = pneg %p50
      %s217 = sadd.s32 %s18, %s19
      %p218 = scmp.lt.s32.totalorder %s217, 1
      %s219 = scalar_select %p218, %s217, 1
      %p220 = scmp.lt.s32.totalorder %s219, 1
      %s221 = scalar_select %p220, %s219, 1
      %s222 = smul.addr %s221, 8
      %s223 = scalar_lea.vmem %s1, %s222
      %p224 = pneg %p85
      %p225 = pneg %p82
      %s226 = sadd.s32 %s18, %s19
      %p227 = scmp.lt.s32.totalorder %s226, 1
      %s228 = scalar_select %p227, %s226, 1
      %p229 = scmp.lt.s32.totalorder %s228, 1
      %s230 = scalar_select %p229, %s228, 1
      %s231 = smul.addr %s230, 8
      %s232 = scalar_lea.vmem %s2, %s231
      %p233 = pneg %p117
      %p234 = pneg %p114
      %p235 = pneg %p143
      %p236 = pneg %p140
      %p237 = scmp.lt.s32.totalorder %s18, 1
      %s238 = scalar_select %p237, %s18, 1
      %s239 = smul.addr %s238, 8
      %s240 = scalar_lea.vmem %s3, %s239
      %s241 = sadd.s32 %s18, %s19
      %p242 = scmp.lt.s32.totalorder %s241, 1
      %s243 = scalar_select %p242, %s241, 1
      %p244 = scmp.lt.s32.totalorder %s243, 1
      %s245 = scalar_select %p244, %s243, 1
      %s246 = smul.addr %s245, 8
      %s247 = scalar_lea.vmem %s0, %s246
      %s248 = sadd.s32 %s18, %s19
      %p249 = scmp.lt.s32.totalorder %s248, 1
      %s250 = scalar_select %p249, %s248, 1
      %s251 = sadd.s32 %s18, %s19
      %p252 = scmp.lt.s32.totalorder %s251, 1
      %s253 = scalar_select %p252, %s251, 1
      %p254 = scmp.lt.s32.totalorder %s253, 1
      %s255 = scalar_select %p254, %s253, 1
      %s256 = smul.addr %s255, 8
      %s257 = scalar_lea.vmem %s1, %s256
      %s258 = sadd.s32 %s18, %s19
      %p259 = scmp.lt.s32.totalorder %s258, 1
      %s260 = scalar_select %p259, %s258, 1
      %s261 = sadd.s32 %s18, %s19
      %p262 = scmp.lt.s32.totalorder %s261, 1
      %s263 = scalar_select %p262, %s261, 1
      %p264 = scmp.lt.s32.totalorder %s263, 1
      %s265 = scalar_select %p264, %s263, 1
      %s266 = smul.addr %s265, 8
      %s267 = scalar_lea.vmem %s2, %s266
      %s268 = sadd.s32 %s18, %s19
      %p269 = scmp.lt.s32.totalorder %s268, 1
      %s270 = scalar_select %p269, %s268, 1
      %p271 = scmp.lt.s32.totalorder %s18, 1
      %s272 = scalar_select %p271, %s18, 1
      %s273 = smul.addr %s272, 8
      %s274 = scalar_lea.vmem %s3, %s273
      %p275 = scmp.eq.s32.totalorder %s19, 0
      // Predicated region
      $region33: #{tpu_custom_call.1} parent=31 // pred_check
        %p276 = pneg %p275
      $region34: #{tpu_custom_call.1} parent=31 // pred_check_branch
        %278 = sbr.rel (%p276) target = $region36
      $region35: #{tpu_custom_call.1} parent=31 // pred_region
        %vm279 = vcmask 7168
        %280 = vst.msk [vmem:[%s274] sm:$0xff] %vm279, 0.0
      $region36: #{tpu_custom_call.1} parent=31 // pred_fallthru
        _
      %v281 = vld [vmem:[%s247] sm:$0xff]
      %vm282 = vcmask 310272
      %v283 = vsel %vm282, %v281, -inf
      %284 = vmax.xlane.f32.xlu0 %v283
      %v285 = vpop.xlane.xlu0 %284
      %v286 = vsub.f32 %v281, %v285
      %v287 = vmul.f32 %v286, 1.442695
      %v288 = vpow.pop %v287
      %v289 = vsel %vm282, %v288, 0.0
      %290 = vadd.xlane.f32.xlu0 %v289
      %v291 = vpop.xlane.xlu0 %290
      %v292 = vlog2.pop %v291
      %v293 = vmul.f32 %v292, 0.6931472
      %v294 = vld [vmem:[%s257] sm:$0xff]
      %v295 = vld [vmem:[%s267] sm:$0xff]
      %v296 = vlaneseq
      %v297 = vand.u32 %v296, 127
      %298 = vset.pattern.permute.xlu0 0
      %299 = vperm.xlu0 %298, %v294
      %v300 = vpop.permute.xlu0 %299
      %vm301 = vcmp.eq.s32.totalorder %v297, %v300
      %303 = vset.pattern.permute.xlu0 0
      %304 = vperm.xlu0 %303, %v295
      %v305 = vpop.permute.xlu0 %304
      %v307 = vsel %vm301, %v305, 0.0
      %v308 = vadd.f32 %v307, 0.0
      %309 = vset.pattern.permute.xlu0 1
      %310 = vperm.xlu0 %309, %v294
      %v311 = vpop.permute.xlu0 %310
      %vm312 = vcmp.eq.s32.totalorder %v297, %v311
      %313 = vset.pattern.permute.xlu0 1
      %314 = vperm.xlu0 %313, %v295
      %v315 = vpop.permute.xlu0 %314
      %v317 = vsel %vm312, %v315, 0.0
      %v318 = vadd.f32 %v308, %v317
      %319 = vset.pattern.permute.xlu0 2
      %320 = vperm.xlu0 %319, %v294
      %v321 = vpop.permute.xlu0 %320
      %vm322 = vcmp.eq.s32.totalorder %v297, %v321
      %323 = vset.pattern.permute.xlu0 2
      %324 = vperm.xlu0 %323, %v295
      %v325 = vpop.permute.xlu0 %324
      %v327 = vsel %vm322, %v325, 0.0
      %v328 = vadd.f32 %v318, %v327
      %v329 = vmul.f32 %v328, %v286
      %v330 = vsel %vm282, %v329, 0.0
      %331 = vadd.xlane.f32.xlu0 %v330
      %v332 = vpop.xlane.xlu0 %331
      %vm333 = vcmask 23552
      %v334 = vsel %vm333, %v295, 0.0
      %335 = vadd.xlane.f32.xlu0 %v334
      %v336 = vpop.xlane.xlu0 %335
      %s337 = sadd.s32 %s18, %s19
      %s338 = smul.u32 %s337, 8
      %v339 = vlaneseq
      %v340 = vshrl.u32 %v339, 7
      %v341 = vstv %s338
      %v342 = vadd.s32 %v341, %v340
      %vm343 = vcmp.lt.s32.totalorder %v342, 16
      %v344 = vmul.f32 %v336, %v293
      %v345 = vsub.f32 %v344, %v332
      %v346 = vsel %vm343, %v345, 0.0
      %v347 = vld [vmem:[%s274] sm:$0xff]
      %vm348 = vcmask 7168
      %v349 = vsel %vm348, %v346, 0.0
      %350 = vadd.xlane.f32.xlu0 %v349
      %v351 = vpop.xlane.xlu0 %350
      %v352 = vrot.slane %v351, 4
      %v353 = vadd.f32 %v351, %v352
      %v354 = vrot.slane %v353, 2
      %v355 = vadd.f32 %v353, %v354
      %v356 = vrot.slane %v355, 1
      %v357 = vadd.f32 %v355, %v356
      %s358 = vtos %v357
      %v359 = vstv %s358
      %v360 = vadd.f32 %v347, %v359
      %361 = vst.msk [vmem:[%s274] sm:$0xff] %vm348, %v360
      %p362 = scmp.lt.s32.totalorder %s18, 1
      %s363 = scalar_select %p362, %s18, 1
      %s364 = smul.addr %s363, 8
      %s365 = scalar_lea.vmem %s3, %s364
      // Predicated region
      $region37: #{tpu_custom_call.1} parent=31 // pred_check
        %p366 = pneg %p140
      $region38: #{tpu_custom_call.1} parent=31 // pred_check_branch
        %368 = sbr.rel (%p366) target = $region40
      $region39: #{tpu_custom_call.1} parent=31 // pred_region
        _
      $region40: #{tpu_custom_call.1} parent=31 // pred_fallthru
        _
    $region32: #{tpu_custom_call.1} parent=5 // pred_fallthru
      _
    %p369 = scmp.le.s32.totalorder 2, %s9
    // Predicated region
    $region41: #{tpu_custom_call.1} parent=5 // pred_check
      %p370 = pneg %p369
    $region42: #{tpu_custom_call.1} parent=5 // pred_check_branch
      %372 = sbr.rel (%p370) target = $region44
    $region43: #{tpu_custom_call.1} parent=5 // pred_region
      %s373 = ssub.s32 %s9, 2
      // Predicated region
      $region45: #{tpu_custom_call.1} parent=43 // pred_check
        %p374 = pneg %p146
      $region46: #{tpu_custom_call.1} parent=43 // pred_check_branch
        %376 = sbr.rel (%p374) target = $region48
      $region47: #{tpu_custom_call.1} parent=43 // pred_region
        %p377 = scmp.lt.s32.totalorder %s20, 1
        %s378 = scalar_select %p377, %s20, 1
        %s379 = smul.addr %s378, 8
        %s380 = scalar_lea.vmem %s3, %s379
      $region48: #{tpu_custom_call.1} parent=43 // pred_fallthru
        _
    $region44: #{tpu_custom_call.1} parent=5 // pred_fallthru
      _
  $region6: #{tpu_custom_call.1} parent=0 // loop_footer
    %s13 = sadd.s32 1, %s9
  $region7: #{tpu_custom_call.1} parent=0 // loop_footer_branch
    %8 = sbr.rel target = $region3
  $region8: #{tpu_custom_call.1} parent=0 // loop_exit
    _

</llo_original>
